<compile_context>
chip_gen: v7x
topology: tpu7x:2x2x1
jax: 0.10.0
libtpu: 0.0.40
codegen_flags: <defaults>
</compile_context>

<pallas_src>
import functools

import jax
import jax.numpy as jnp
from jax.experimental import pallas as pl
from jax.experimental.pallas import tpu as pltpu


# ---------------------------------------------------------------------------
# Pallas kernel: fused y = (x @ W) + b, optional ReLU epilogue.
# ---------------------------------------------------------------------------
def _fused_linear_kernel(x_ref, w_ref, b_ref, o_ref, *, apply_relu):
    k = pl.program_id(2)

    @pl.when(k == 0)
    def _():
        o_ref[...] = jnp.zeros_like(o_ref)

    # bf16 operands -> MXU, f32 accumulation directly into the resident f32
    # output tile (output block index is constant along the k axis, so no
    # extra VMEM accumulator is needed).
    o_ref[...] += jnp.dot(x_ref[...], w_ref[...],
                          preferred_element_type=jnp.float32)

    @pl.when(k == pl.num_programs(2) - 1)
    def _():
        y = o_ref[...] + b_ref[...]
        if apply_relu:
            y = jnp.maximum(y, 0.0)
        o_ref[...] = y


def _round_up(v, m):
    return ((v + m - 1) // m) * m


def fused_linear(x, w_t, b, *, relu, tm=256, tn=256, tk=512):
    """y = relu?(x @ w_t + b).  x: [B, K] f32, w_t: [K, N] f32, b: [N] f32."""
    B, K = x.shape
    Kw, N = w_t.shape
    assert K == Kw

    # MXU-native tile targets, clamped to (padded) array dims.
    # N is padded to a multiple of 128 -> lane-dense, unmasked output stores.
    tm = min(tm, _round_up(B, 8))
    tn = min(tn, _round_up(N, 128))
    tk = min(tk, _round_up(K, 128))
    Bp = _round_up(B, tm)
    Np = _round_up(N, tn)
    Kp = _round_up(K, tk)

    # Zero padding: padded K columns / W rows contribute 0, padded N columns
    # and batch rows are sliced off below.  bf16 operands halve HBM/VMEM bytes.
    xp = jnp.zeros((Bp, Kp), jnp.bfloat16).at[:B, :K].set(x.astype(jnp.bfloat16))
    wp = jnp.zeros((Kp, Np), jnp.bfloat16).at[:K, :N].set(w_t.astype(jnp.bfloat16))
    bp = jnp.zeros((1, Np), jnp.float32).at[0, :N].set(b.astype(jnp.float32))

    grid = (Bp // tm, Np // tn, Kp // tk)

    out = pl.pallas_call(
        functools.partial(_fused_linear_kernel, apply_relu=relu),
        out_shape=jax.ShapeDtypeStruct((Bp, Np), jnp.float32),
        grid_spec=pltpu.PrefetchScalarGridSpec(
            num_scalar_prefetch=0,
            grid=grid,
            in_specs=[
                pl.BlockSpec((tm, tk), lambda i, j, k: (i, k)),   # x tile
                pl.BlockSpec((tk, tn), lambda i, j, k: (k, j)),   # w tile
                pl.BlockSpec((1, tn), lambda i, j, k: (0, j)),    # folded bias
            ],
            out_specs=pl.BlockSpec((tm, tn), lambda i, j, k: (i, j)),
        ),
        compiler_params=pltpu.CompilerParams(
            dimension_semantics=("parallel", "parallel", "arbitrary")
        ),
    )(xp, wp, bp)
    return out[:B, :N]


# ---------------------------------------------------------------------------
# Reference unit (same bf16 operand precision as the kernel, pure XLA).
# ---------------------------------------------------------------------------
def ref_linear(x, w_t, b, *, relu):
    y = jnp.dot(x.astype(jnp.bfloat16), w_t.astype(jnp.bfloat16),
                preferred_element_type=jnp.float32) + b[None, :]
    return jnp.maximum(y, 0.0) if relu else y


# ---------------------------------------------------------------------------
# Parameter construction (PyTorch-style inits) + BN folding.
# ---------------------------------------------------------------------------
def _make_linear(key, n_in, n_out):
    kw, kb = jax.random.split(key)
    bound = 1.0 / (n_in ** 0.5)
    w = jax.random.uniform(kw, (n_out, n_in), jnp.float32, -bound, bound)
    b = jax.random.uniform(kb, (n_out,), jnp.float32, -bound, bound)
    return w, b


def _make_bn(key, n):
    kg, kb, km, kv = jax.random.split(key, 4)
    gamma = 1.0 + 0.1 * jax.random.normal(kg, (n,), jnp.float32)
    beta = 0.1 * jax.random.normal(kb, (n,), jnp.float32)
    mean = 0.1 * jax.random.normal(km, (n,), jnp.float32)
    var = jnp.abs(1.0 + 0.1 * jax.random.normal(kv, (n,), jnp.float32))
    return gamma, beta, mean, var


def _fold_bn_linear(bn, lin, eps):
    gamma, beta, mean, var = bn
    w, b = lin                              # w: [n_out, n_in]
    s = gamma / jnp.sqrt(var + eps)         # per input feature
    t = beta - mean * s
    w_eff = w * s[None, :]                  # fold BN scale into weights
    b_eff = b + w @ t                       # fold BN shift into bias
    return w_eff.T, b_eff                   # [n_in, n_out], [n_out]


def build_dense_model_params(key, n_in, n_out, block_config, growth_size,
                             bn_factor, compression, eps):
    keys = iter(jax.random.split(key, 64))
    params = {"blocks": [], "transitions": [], "final": None}
    num_features = n_in
    for bi, num_layers in enumerate(block_config):
        layers = []
        for li in range(num_layers):
            lin_in = num_features + li * growth_size
            hid = int(bn_factor * lin_in)
            u1 = _fold_bn_linear(_make_bn(next(keys), lin_in),
                                 _make_linear(next(keys), lin_in, hid), eps)
            u2 = _fold_bn_linear(_make_bn(next(keys), hid),
                                 _make_linear(next(keys), hid, growth_size), eps)
            layers.append((u1, u2))
        params["blocks"].append(layers)
        num_features = num_features + num_layers * growth_size
        if bi != len(block_config) - 1:
            n_trans = max(10, int(num_features * compression))
            ut = _fold_bn_linear(_make_bn(next(keys), num_features),
                                 _make_linear(next(keys), num_features, n_trans),
                                 eps)
            params["transitions"].append(ut)
            num_features = n_trans
    params["final"] = _fold_bn_linear(_make_bn(next(keys), num_features),
                                      _make_linear(next(keys), num_features, n_out),
                                      eps)
    return params


# ---------------------------------------------------------------------------
# DenseModel forward (eval mode), generic over the linear unit implementation.
# ---------------------------------------------------------------------------
def dense_model_forward(x, params, linear_fn):
    feats = x
    t_idx = 0
    n_blocks = len(params["blocks"])
    for bi, layers in enumerate(params["blocks"]):
        block_feats = [feats]
        for (w1, b1), (w2, b2) in layers:
            h = jnp.concatenate(block_feats, axis=1)
            h = linear_fn(h, w1, b1, relu=True)   # norm1 -> dense1 -> act1 (folded)
            h = linear_fn(h, w2, b2, relu=True)   # norm2 -> dense2 -> act2; dropout = id (eval)
            block_feats.append(h)
        feats = jnp.concatenate(block_feats, axis=1)
        if bi != n_blocks - 1:
            wt, bt = params["transitions"][t_idx]
            t_idx += 1
            feats = linear_fn(feats, wt, bt, relu=True)   # Transition (folded)
    wf, bf = params["final"]                              # norm_final + fc (folded)
    out = linear_fn(feats, wf, bf, relu=False)
    return out.reshape(out.shape[0], -1)


if __name__ == "__main__":
    # Small shapes consistent with DenseModel (scaled-down growth_size).
    B = 16
    n_in = 16
    n_out = 1
    block_config = [2, 2]
    growth_size = 32
    bn_factor = 2
    compression = 0.5
    eps = 1e-5

    key = jax.random.PRNGKey(0)
    kx, kp = jax.random.split(key)
    x = jax.random.normal(kx, (B, n_in), dtype=jnp.float32)

    params = build_dense_model_params(kp, n_in, n_out, block_config,
                                      growth_size, bn_factor, compression, eps)

    pallas_forward = jax.jit(
        lambda xx, pp: dense_model_forward(xx, pp, fused_linear))
    out = jax.block_until_ready(pallas_forward(x, params))

    ref = dense_model_forward(x, params, ref_linear)

    assert out.shape == (B, n_out), out.shape
    assert jnp.allclose(out, ref, atol=3e-2, rtol=3e-2), (
        "mismatch vs reference: max abs err = "
        f"{float(jnp.max(jnp.abs(out - ref)))}")

    print("KERNEL_OK")
</pallas_src>

<mosaic_0001>
module attributes {stable_mosaic.version = 11 : i64} {
  func.func @_fused_linear_kernel(%arg0: i32, %arg1: i32, %arg2: i32, %arg3: memref<16x128xbf16, #tpu.memory_space<vmem>>, %arg4: memref<128x128xbf16, #tpu.memory_space<vmem>>, %arg5: memref<1x128xf32, #tpu.memory_space<vmem>>, %arg6: memref<16x128xf32, #tpu.memory_space<vmem>>) attributes {dimension_semantics = [#tpu.dimension_semantics<parallel>, #tpu.dimension_semantics<parallel>, #tpu.dimension_semantics<arbitrary>], iteration_bounds = array<i64: 1, 1, 1>, scalar_prefetch = 0 : i64, scratch_operands = 0 : i64, tpu.core_type = #tpu.core_type<tc>, window_params = [{transform_indices = @transform_0, window_bounds = array<i64: 16, 128>}, {transform_indices = @transform_1, window_bounds = array<i64: 128, 128>}, {transform_indices = @transform_2, window_bounds = array<i64: 1, 128>}, {transform_indices = @transform_3, window_bounds = array<i64: 16, 128>}]} {
    %c0_i32 = arith.constant 0 : i32
    %0 = arith.cmpi eq, %arg2, %c0_i32 : i32
    %1 = arith.extui %0 : i1 to i32
    %c0_i32_0 = arith.constant 0 : i32
    %2 = arith.cmpi ne, %1, %c0_i32_0 : i32
    scf.if %2 {
      %cst_10 = arith.constant 0.000000e+00 : f32
      %12 = vector.broadcast %cst_10 : f32 to vector<16x128xf32>
      %c0_11 = arith.constant 0 : index
      %c0_12 = arith.constant 0 : index
      %13 = vector.load %arg6[%c0_11, %c0_12] : memref<16x128xf32, #tpu.memory_space<vmem>>, vector<16x128xf32>
      tpu.vector_store %arg6[%c0_11, %c0_12], %12 {strides = array<i32>} : memref<16x128xf32, #tpu.memory_space<vmem>>, vector<16x128xf32>,
    } else {
    }
    %c0 = arith.constant 0 : index
    %c0_1 = arith.constant 0 : index
    %3 = vector.load %arg6[%c0, %c0_1] : memref<16x128xf32, #tpu.memory_space<vmem>>, vector<16x128xf32>
    %c0_2 = arith.constant 0 : index
    %c0_3 = arith.constant 0 : index
    %4 = vector.load %arg3[%c0_2, %c0_3] : memref<16x128xbf16, #tpu.memory_space<vmem>>, vector<16x128xbf16>
    %c0_4 = arith.constant 0 : index
    %c0_5 = arith.constant 0 : index
    %5 = vector.load %arg4[%c0_4, %c0_5] : memref<128x128xbf16, #tpu.memory_space<vmem>>, vector<128x128xbf16>
    %cst = arith.constant dense<0.000000e+00> : vector<16x128xf32>
    %6 = tpu.matmul %4, %5, %cst {dimension_numbers = #tpu.dot_dimension_numbers<[1], [0], [0], [1], [0, 0, 1, 1], [], []>} : vector<16x128xbf16>, vector<128x128xbf16>, vector<16x128xf32> -> vector<16x128xf32>
    %7 = arith.addf %3, %6 : vector<16x128xf32>
    %c0_6 = arith.constant 0 : index
    %c0_7 = arith.constant 0 : index
    %8 = vector.load %arg6[%c0_6, %c0_7] : memref<16x128xf32, #tpu.memory_space<vmem>>, vector<16x128xf32>
    tpu.vector_store %arg6[%c0_6, %c0_7], %7 {strides = array<i32>} : memref<16x128xf32, #tpu.memory_space<vmem>>, vector<16x128xf32>,
    %c0_i32_8 = arith.constant 0 : i32
    %9 = arith.cmpi eq, %arg2, %c0_i32_8 : i32
    %10 = arith.extui %9 : i1 to i32
    %c0_i32_9 = arith.constant 0 : i32
    %11 = arith.cmpi ne, %10, %c0_i32_9 : i32
    scf.if %11 {
      %c0_10 = arith.constant 0 : index
      %c0_11 = arith.constant 0 : index
      %12 = vector.load %arg6[%c0_10, %c0_11] : memref<16x128xf32, #tpu.memory_space<vmem>>, vector<16x128xf32>
      %c0_12 = arith.constant 0 : index
      %c0_13 = arith.constant 0 : index
      %13 = vector.load %arg5[%c0_12, %c0_13] : memref<1x128xf32, #tpu.memory_space<vmem>>, vector<1x128xf32>
      %14 = vector.broadcast %13 : vector<1x128xf32> to vector<16x128xf32>
      %15 = arith.addf %12, %14 : vector<16x128xf32>
      %cst_14 = arith.constant 0.000000e+00 : f32
      %16 = vector.broadcast %cst_14 : f32 to vector<16x128xf32>
      %17 = arith.maximumf %15, %16 : vector<16x128xf32>
      %c0_15 = arith.constant 0 : index
      %c0_16 = arith.constant 0 : index
      %18 = vector.load %arg6[%c0_15, %c0_16] : memref<16x128xf32, #tpu.memory_space<vmem>>, vector<16x128xf32>
      tpu.vector_store %arg6[%c0_15, %c0_16], %17 {strides = array<i32>} : memref<16x128xf32, #tpu.memory_space<vmem>>, vector<16x128xf32>,
    } else {
    }
    return
  }
  func.func @transform_0(%arg0: i32, %arg1: i32, %arg2: i32) -> (i32, i32) {
    %c0_i32 = arith.constant 0 : i32
    return %arg0, %arg2 : i32, i32
  }
  func.func @transform_1(%arg0: i32, %arg1: i32, %arg2: i32) -> (i32, i32) {
    %c0_i32 = arith.constant 0 : i32
    return %arg2, %arg1 : i32, i32
  }
  func.func @transform_2(%arg0: i32, %arg1: i32, %arg2: i32) -> (i32, i32) {
    %c0_i32 = arith.constant 0 : i32
    %c0_i32_0 = arith.constant 0 : i32
    return %c0_i32, %arg1 : i32, i32
  }
  func.func @transform_3(%arg0: i32, %arg1: i32, %arg2: i32) -> (i32, i32) {
    %c0_i32 = arith.constant 0 : i32
    return %arg0, %arg1 : i32, i32
  }
}

module attributes {stable_mosaic.version = 11 : i64} {
  func.func @_fused_linear_kernel(%arg0: i32, %arg1: i32, %arg2: i32, %arg3: memref<16x128xbf16, #tpu.memory_space<vmem>>, %arg4: memref<128x256xbf16, #tpu.memory_space<vmem>>, %arg5: memref<1x256xf32, #tpu.memory_space<vmem>>, %arg6: memref<16x256xf32, #tpu.memory_space<vmem>>) attributes {dimension_semantics = [#tpu.dimension_semantics<parallel>, #tpu.dimension_semantics<parallel>, #tpu.dimension_semantics<arbitrary>], iteration_bounds = array<i64: 1, 1, 1>, scalar_prefetch = 0 : i64, scratch_operands = 0 : i64, tpu.core_type = #tpu.core_type<tc>, window_params = [{transform_indices = @transform_0, window_bounds = array<i64: 16, 128>}, {transform_indices = @transform_1, window_bounds = array<i64: 128, 256>}, {transform_indices = @transform_2, window_bounds = array<i64: 1, 256>}, {transform_indices = @transform_3, window_bounds = array<i64: 16, 256>}]} {
    %c0_i32 = arith.constant 0 : i32
    %0 = arith.cmpi eq, %arg2, %c0_i32 : i32
    %1 = arith.extui %0 : i1 to i32
    %c0_i32_0 = arith.constant 0 : i32
    %2 = arith.cmpi ne, %1, %c0_i32_0 : i32
    scf.if %2 {
      %cst_10 = arith.constant 0.000000e+00 : f32
      %12 = vector.broadcast %cst_10 : f32 to vector<16x256xf32>
      %c0_11 = arith.constant 0 : index
      %c0_12 = arith.constant 0 : index
      %13 = vector.load %arg6[%c0_11, %c0_12] : memref<16x256xf32, #tpu.memory_space<vmem>>, vector<16x256xf32>
      tpu.vector_store %arg6[%c0_11, %c0_12], %12 {strides = array<i32>} : memref<16x256xf32, #tpu.memory_space<vmem>>, vector<16x256xf32>,
    } else {
    }
    %c0 = arith.constant 0 : index
    %c0_1 = arith.constant 0 : index
    %3 = vector.load %arg6[%c0, %c0_1] : memref<16x256xf32, #tpu.memory_space<vmem>>, vector<16x256xf32>
    %c0_2 = arith.constant 0 : index
    %c0_3 = arith.constant 0 : index
    %4 = vector.load %arg3[%c0_2, %c0_3] : memref<16x128xbf16, #tpu.memory_space<vmem>>, vector<16x128xbf16>
    %c0_4 = arith.constant 0 : index
    %c0_5 = arith.constant 0 : index
    %5 = vector.load %arg4[%c0_4, %c0_5] : memref<128x256xbf16, #tpu.memory_space<vmem>>, vector<128x256xbf16>
    %cst = arith.constant dense<0.000000e+00> : vector<16x256xf32>
    %6 = tpu.matmul %4, %5, %cst {dimension_numbers = #tpu.dot_dimension_numbers<[1], [0], [0], [1], [0, 0, 1, 1], [], []>} : vector<16x128xbf16>, vector<128x256xbf16>, vector<16x256xf32> -> vector<16x256xf32>
    %7 = arith.addf %3, %6 : vector<16x256xf32>
    %c0_6 = arith.constant 0 : index
    %c0_7 = arith.constant 0 : index
    %8 = vector.load %arg6[%c0_6, %c0_7] : memref<16x256xf32, #tpu.memory_space<vmem>>, vector<16x256xf32>
    tpu.vector_store %arg6[%c0_6, %c0_7], %7 {strides = array<i32>} : memref<16x256xf32, #tpu.memory_space<vmem>>, vector<16x256xf32>,
    %c0_i32_8 = arith.constant 0 : i32
    %9 = arith.cmpi eq, %arg2, %c0_i32_8 : i32
    %10 = arith.extui %9 : i1 to i32
    %c0_i32_9 = arith.constant 0 : i32
    %11 = arith.cmpi ne, %10, %c0_i32_9 : i32
    scf.if %11 {
      %c0_10 = arith.constant 0 : index
      %c0_11 = arith.constant 0 : index
      %12 = vector.load %arg6[%c0_10, %c0_11] : memref<16x256xf32, #tpu.memory_space<vmem>>, vector<16x256xf32>
      %c0_12 = arith.constant 0 : index
      %c0_13 = arith.constant 0 : index
      %13 = vector.load %arg5[%c0_12, %c0_13] : memref<1x256xf32, #tpu.memory_space<vmem>>, vector<1x256xf32>
      %14 = vector.broadcast %13 : vector<1x256xf32> to vector<16x256xf32>
      %15 = arith.addf %12, %14 : vector<16x256xf32>
      %cst_14 = arith.constant 0.000000e+00 : f32
      %16 = vector.broadcast %cst_14 : f32 to vector<16x256xf32>
      %17 = arith.maximumf %15, %16 : vector<16x256xf32>
      %c0_15 = arith.constant 0 : index
      %c0_16 = arith.constant 0 : index
      %18 = vector.load %arg6[%c0_15, %c0_16] : memref<16x256xf32, #tpu.memory_space<vmem>>, vector<16x256xf32>
      tpu.vector_store %arg6[%c0_15, %c0_16], %17 {strides = array<i32>} : memref<16x256xf32, #tpu.memory_space<vmem>>, vector<16x256xf32>,
    } else {
    }
    return
  }
  func.func @transform_0(%arg0: i32, %arg1: i32, %arg2: i32) -> (i32, i32) {
    %c0_i32 = arith.constant 0 : i32
    return %arg0, %arg2 : i32, i32
  }
  func.func @transform_1(%arg0: i32, %arg1: i32, %arg2: i32) -> (i32, i32) {
    %c0_i32 = arith.constant 0 : i32
    return %arg2, %arg1 : i32, i32
  }
  func.func @transform_2(%arg0: i32, %arg1: i32, %arg2: i32) -> (i32, i32) {
    %c0_i32 = arith.constant 0 : i32
    %c0_i32_0 = arith.constant 0 : i32
    return %c0_i32, %arg1 : i32, i32
  }
  func.func @transform_3(%arg0: i32, %arg1: i32, %arg2: i32) -> (i32, i32) {
    %c0_i32 = arith.constant 0 : i32
    return %arg0, %arg1 : i32, i32
  }
}

module attributes {stable_mosaic.version = 11 : i64} {
  func.func @_fused_linear_kernel(%arg0: i32, %arg1: i32, %arg2: i32, %arg3: memref<16x256xbf16, #tpu.memory_space<vmem>>, %arg4: memref<256x128xbf16, #tpu.memory_space<vmem>>, %arg5: memref<1x128xf32, #tpu.memory_space<vmem>>, %arg6: memref<16x128xf32, #tpu.memory_space<vmem>>) attributes {dimension_semantics = [#tpu.dimension_semantics<parallel>, #tpu.dimension_semantics<parallel>, #tpu.dimension_semantics<arbitrary>], iteration_bounds = array<i64: 1, 1, 1>, scalar_prefetch = 0 : i64, scratch_operands = 0 : i64, tpu.core_type = #tpu.core_type<tc>, window_params = [{transform_indices = @transform_0, window_bounds = array<i64: 16, 256>}, {transform_indices = @transform_1, window_bounds = array<i64: 256, 128>}, {transform_indices = @transform_2, window_bounds = array<i64: 1, 128>}, {transform_indices = @transform_3, window_bounds = array<i64: 16, 128>}]} {
    %c0_i32 = arith.constant 0 : i32
    %0 = arith.cmpi eq, %arg2, %c0_i32 : i32
    %1 = arith.extui %0 : i1 to i32
    %c0_i32_0 = arith.constant 0 : i32
    %2 = arith.cmpi ne, %1, %c0_i32_0 : i32
    scf.if %2 {
      %cst_10 = arith.constant 0.000000e+00 : f32
      %12 = vector.broadcast %cst_10 : f32 to vector<16x128xf32>
      %c0_11 = arith.constant 0 : index
      %c0_12 = arith.constant 0 : index
      %13 = vector.load %arg6[%c0_11, %c0_12] : memref<16x128xf32, #tpu.memory_space<vmem>>, vector<16x128xf32>
      tpu.vector_store %arg6[%c0_11, %c0_12], %12 {strides = array<i32>} : memref<16x128xf32, #tpu.memory_space<vmem>>, vector<16x128xf32>,
    } else {
    }
    %c0 = arith.constant 0 : index
    %c0_1 = arith.constant 0 : index
    %3 = vector.load %arg6[%c0, %c0_1] : memref<16x128xf32, #tpu.memory_space<vmem>>, vector<16x128xf32>
    %c0_2 = arith.constant 0 : index
    %c0_3 = arith.constant 0 : index
    %4 = vector.load %arg3[%c0_2, %c0_3] : memref<16x256xbf16, #tpu.memory_space<vmem>>, vector<16x256xbf16>
    %c0_4 = arith.constant 0 : index
    %c0_5 = arith.constant 0 : index
    %5 = vector.load %arg4[%c0_4, %c0_5] : memref<256x128xbf16, #tpu.memory_space<vmem>>, vector<256x128xbf16>
    %cst = arith.constant dense<0.000000e+00> : vector<16x128xf32>
    %6 = tpu.matmul %4, %5, %cst {dimension_numbers = #tpu.dot_dimension_numbers<[1], [0], [0], [1], [0, 0, 1, 1], [], []>} : vector<16x256xbf16>, vector<256x128xbf16>, vector<16x128xf32> -> vector<16x128xf32>
    %7 = arith.addf %3, %6 : vector<16x128xf32>
    %c0_6 = arith.constant 0 : index
    %c0_7 = arith.constant 0 : index
    %8 = vector.load %arg6[%c0_6, %c0_7] : memref<16x128xf32, #tpu.memory_space<vmem>>, vector<16x128xf32>
    tpu.vector_store %arg6[%c0_6, %c0_7], %7 {strides = array<i32>} : memref<16x128xf32, #tpu.memory_space<vmem>>, vector<16x128xf32>,
    %c0_i32_8 = arith.constant 0 : i32
    %9 = arith.cmpi eq, %arg2, %c0_i32_8 : i32
    %10 = arith.extui %9 : i1 to i32
    %c0_i32_9 = arith.constant 0 : i32
    %11 = arith.cmpi ne, %10, %c0_i32_9 : i32
    scf.if %11 {
      %c0_10 = arith.constant 0 : index
      %c0_11 = arith.constant 0 : index
      %12 = vector.load %arg6[%c0_10, %c0_11] : memref<16x128xf32, #tpu.memory_space<vmem>>, vector<16x128xf32>
      %c0_12 = arith.constant 0 : index
      %c0_13 = arith.constant 0 : index
      %13 = vector.load %arg5[%c0_12, %c0_13] : memref<1x128xf32, #tpu.memory_space<vmem>>, vector<1x128xf32>
      %14 = vector.broadcast %13 : vector<1x128xf32> to vector<16x128xf32>
      %15 = arith.addf %12, %14 : vector<16x128xf32>
      %cst_14 = arith.constant 0.000000e+00 : f32
      %16 = vector.broadcast %cst_14 : f32 to vector<16x128xf32>
      %17 = arith.maximumf %15, %16 : vector<16x128xf32>
      %c0_15 = arith.constant 0 : index
      %c0_16 = arith.constant 0 : index
      %18 = vector.load %arg6[%c0_15, %c0_16] : memref<16x128xf32, #tpu.memory_space<vmem>>, vector<16x128xf32>
      tpu.vector_store %arg6[%c0_15, %c0_16], %17 {strides = array<i32>} : memref<16x128xf32, #tpu.memory_space<vmem>>, vector<16x128xf32>,
    } else {
    }
    return
  }
  func.func @transform_0(%arg0: i32, %arg1: i32, %arg2: i32) -> (i32, i32) {
    %c0_i32 = arith.constant 0 : i32
    return %arg0, %arg2 : i32, i32
  }
  func.func @transform_1(%arg0: i32, %arg1: i32, %arg2: i32) -> (i32, i32) {
    %c0_i32 = arith.constant 0 : i32
    return %arg2, %arg1 : i32, i32
  }
  func.func @transform_2(%arg0: i32, %arg1: i32, %arg2: i32) -> (i32, i32) {
    %c0_i32 = arith.constant 0 : i32
    %c0_i32_0 = arith.constant 0 : i32
    return %c0_i32, %arg1 : i32, i32
  }
  func.func @transform_3(%arg0: i32, %arg1: i32, %arg2: i32) -> (i32, i32) {
    %c0_i32 = arith.constant 0 : i32
    return %arg0, %arg1 : i32, i32
  }
}

module attributes {stable_mosaic.version = 11 : i64} {
  func.func @_fused_linear_kernel(%arg0: i32, %arg1: i32, %arg2: i32, %arg3: memref<16x128xbf16, #tpu.memory_space<vmem>>, %arg4: memref<128x128xbf16, #tpu.memory_space<vmem>>, %arg5: memref<1x128xf32, #tpu.memory_space<vmem>>, %arg6: memref<16x128xf32, #tpu.memory_space<vmem>>) attributes {dimension_semantics = [#tpu.dimension_semantics<parallel>, #tpu.dimension_semantics<parallel>, #tpu.dimension_semantics<arbitrary>], iteration_bounds = array<i64: 1, 1, 1>, scalar_prefetch = 0 : i64, scratch_operands = 0 : i64, tpu.core_type = #tpu.core_type<tc>, window_params = [{transform_indices = @transform_0, window_bounds = array<i64: 16, 128>}, {transform_indices = @transform_1, window_bounds = array<i64: 128, 128>}, {transform_indices = @transform_2, window_bounds = array<i64: 1, 128>}, {transform_indices = @transform_3, window_bounds = array<i64: 16, 128>}]} {
    %c0_i32 = arith.constant 0 : i32
    %0 = arith.cmpi eq, %arg2, %c0_i32 : i32
    %1 = arith.extui %0 : i1 to i32
    %c0_i32_0 = arith.constant 0 : i32
    %2 = arith.cmpi ne, %1, %c0_i32_0 : i32
    scf.if %2 {
      %cst_10 = arith.constant 0.000000e+00 : f32
      %12 = vector.broadcast %cst_10 : f32 to vector<16x128xf32>
      %c0_11 = arith.constant 0 : index
      %c0_12 = arith.constant 0 : index
      %13 = vector.load %arg6[%c0_11, %c0_12] : memref<16x128xf32, #tpu.memory_space<vmem>>, vector<16x128xf32>
      tpu.vector_store %arg6[%c0_11, %c0_12], %12 {strides = array<i32>} : memref<16x128xf32, #tpu.memory_space<vmem>>, vector<16x128xf32>,
    } else {
    }
    %c0 = arith.constant 0 : index
    %c0_1 = arith.constant 0 : index
    %3 = vector.load %arg6[%c0, %c0_1] : memref<16x128xf32, #tpu.memory_space<vmem>>, vector<16x128xf32>
    %c0_2 = arith.constant 0 : index
    %c0_3 = arith.constant 0 : index
    %4 = vector.load %arg3[%c0_2, %c0_3] : memref<16x128xbf16, #tpu.memory_space<vmem>>, vector<16x128xbf16>
    %c0_4 = arith.constant 0 : index
    %c0_5 = arith.constant 0 : index
    %5 = vector.load %arg4[%c0_4, %c0_5] : memref<128x128xbf16, #tpu.memory_space<vmem>>, vector<128x128xbf16>
    %cst = arith.constant dense<0.000000e+00> : vector<16x128xf32>
    %6 = tpu.matmul %4, %5, %cst {dimension_numbers = #tpu.dot_dimension_numbers<[1], [0], [0], [1], [0, 0, 1, 1], [], []>} : vector<16x128xbf16>, vector<128x128xbf16>, vector<16x128xf32> -> vector<16x128xf32>
    %7 = arith.addf %3, %6 : vector<16x128xf32>
    %c0_6 = arith.constant 0 : index
    %c0_7 = arith.constant 0 : index
    %8 = vector.load %arg6[%c0_6, %c0_7] : memref<16x128xf32, #tpu.memory_space<vmem>>, vector<16x128xf32>
    tpu.vector_store %arg6[%c0_6, %c0_7], %7 {strides = array<i32>} : memref<16x128xf32, #tpu.memory_space<vmem>>, vector<16x128xf32>,
    %c0_i32_8 = arith.constant 0 : i32
    %9 = arith.cmpi eq, %arg2, %c0_i32_8 : i32
    %10 = arith.extui %9 : i1 to i32
    %c0_i32_9 = arith.constant 0 : i32
    %11 = arith.cmpi ne, %10, %c0_i32_9 : i32
    scf.if %11 {
      %c0_10 = arith.constant 0 : index
      %c0_11 = arith.constant 0 : index
      %12 = vector.load %arg6[%c0_10, %c0_11] : memref<16x128xf32, #tpu.memory_space<vmem>>, vector<16x128xf32>
      %c0_12 = arith.constant 0 : index
      %c0_13 = arith.constant 0 : index
      %13 = vector.load %arg5[%c0_12, %c0_13] : memref<1x128xf32, #tpu.memory_space<vmem>>, vector<1x128xf32>
      %14 = vector.broadcast %13 : vector<1x128xf32> to vector<16x128xf32>
      %15 = arith.addf %12, %14 : vector<16x128xf32>
      %c0_14 = arith.constant 0 : index
      %c0_15 = arith.constant 0 : index
      %16 = vector.load %arg6[%c0_14, %c0_15] : memref<16x128xf32, #tpu.memory_space<vmem>>, vector<16x128xf32>
      tpu.vector_store %arg6[%c0_14, %c0_15], %15 {strides = array<i32>} : memref<16x128xf32, #tpu.memory_space<vmem>>, vector<16x128xf32>,
    } else {
    }
    return
  }
  func.func @transform_0(%arg0: i32, %arg1: i32, %arg2: i32) -> (i32, i32) {
    %c0_i32 = arith.constant 0 : i32
    return %arg0, %arg2 : i32, i32
  }
  func.func @transform_1(%arg0: i32, %arg1: i32, %arg2: i32) -> (i32, i32) {
    %c0_i32 = arith.constant 0 : i32
    return %arg2, %arg1 : i32, i32
  }
  func.func @transform_2(%arg0: i32, %arg1: i32, %arg2: i32) -> (i32, i32) {
    %c0_i32 = arith.constant 0 : i32
    %c0_i32_0 = arith.constant 0 : i32
    return %c0_i32, %arg1 : i32, i32
  }
  func.func @transform_3(%arg0: i32, %arg1: i32, %arg2: i32) -> (i32, i32) {
    %c0_i32 = arith.constant 0 : i32
    return %arg0, %arg1 : i32, i32
  }
}

</mosaic_0001>

<llo_original>
// kernel: _lambda_.10
$region0: #{_lambda_.10}
  #allocation0 [shape = 'u32[]', space=smem, size = 0x4, offset = 0x4, fixed_abs, tag = 'smem constant byte address 0x4 - core index']
  #allocation1 [shape = 'u32[144,128]{1,0:T(1,128)}', space=vmem, size = 0x12000, scoped, tag = 'internal scratch']
  %s0 = inlined_call_operand.vmem [shape: bf16[16,128], index: 0, kind: input, shape index: {}]
  %s1 = inlined_call_operand.vmem [shape: bf16[128,128], index: 1, kind: input, shape index: {}]
  %s2 = inlined_call_operand.vmem [shape: f32[1,128], index: 2, kind: input, shape index: {}]
  %s3 = inlined_call_operand.vmem [shape: f32[16,128], index: 3, kind: output, shape index: {}]
  %s4 = sld [smem:[#allocation0]]
  $region30: #{_lambda_.10} parent=0
    _
  %s6 = ssub.s32 1, %s4
  %s7 = scalar_select 0, %s6, %s4
  // Predicated region
  $region2: #{_lambda_.10} parent=0 // pred_check
    _
  $region3: #{_lambda_.10} parent=0 // pred_check_branch
    %9 = sbr.rel (0) target = $region5
  $region4: #{_lambda_.10} parent=0 // pred_region
    _
  $region5: #{_lambda_.10} parent=0 // pred_fallthru
    _
  // Predicated region
  $region6: #{_lambda_.10} parent=0 // pred_check
    _
  $region7: #{_lambda_.10} parent=0 // pred_check_branch
    %11 = sbr.rel (0) target = $region9
  $region8: #{_lambda_.10} parent=0 // pred_region
    _
  $region9: #{_lambda_.10} parent=0 // pred_fallthru
    _
  // Predicated region
  $region10: #{_lambda_.10} parent=0 // pred_check
    _
  $region11: #{_lambda_.10} parent=0 // pred_check_branch
    %13 = sbr.rel (0) target = $region13
  $region12: #{_lambda_.10} parent=0 // pred_region
    _
  $region13: #{_lambda_.10} parent=0 // pred_fallthru
    _
  %p15 = scmp.eq.s32.totalorder 0, 0
  // Predicated region
  $region14: #{_lambda_.10} parent=0 // pred_check
    %p16 = pneg %p15
  $region15: #{_lambda_.10} parent=0 // pred_check_branch
    %18 = sbr.rel (%p16) target = $region17
  $region16: #{_lambda_.10} parent=0 // pred_region
    %19 = vst [vmem:[%s3] sm:$0xff] 0.0
    %20 = vst [vmem:[%s3 + $0x8] sm:$0xff] 0.0
  $region17: #{_lambda_.10} parent=0 // pred_fallthru
    _
  %v21 = vld [vmem:[%s3] sm:$0xff]
  %v22 = vld [vmem:[%s3 + $0x8] sm:$0xff]
  %v23 = vld [vmem:[%s0] sm:$0xf]
  %v24 = vld [vmem:[%s0 + $0x4] sm:$0xf]
  %v25 = vld [vmem:[%s1] sm:$0xf]
  %v26 = vld [vmem:[%s1 + $0x4] sm:$0xf]
  %v27 = vld [vmem:[%s1 + $0x8] sm:$0xf]
  %v28 = vld [vmem:[%s1 + $0xc] sm:$0xf]
  %v29 = vld [vmem:[%s1 + $0x10] sm:$0xf]
  %v30 = vld [vmem:[%s1 + $0x14] sm:$0xf]
  %v31 = vld [vmem:[%s1 + $0x18] sm:$0xf]
  %v32 = vld [vmem:[%s1 + $0x1c] sm:$0xf]
  %v33 = vld [vmem:[%s1 + $0x20] sm:$0xf]
  %v34 = vld [vmem:[%s1 + $0x24] sm:$0xf]
  %v35 = vld [vmem:[%s1 + $0x28] sm:$0xf]
  %v36 = vld [vmem:[%s1 + $0x2c] sm:$0xf]
  %v37 = vld [vmem:[%s1 + $0x30] sm:$0xf]
  %v38 = vld [vmem:[%s1 + $0x34] sm:$0xf]
  %v39 = vld [vmem:[%s1 + $0x38] sm:$0xf]
  %v40 = vld [vmem:[%s1 + $0x3c] sm:$0xf]
  %v43 = vunpack.c.l.b16 %v23
  %v44 = vunpack.c.l.b16 %v24
  %v45 = vpack.c.b16 %v44, %v43
  %v63 = vunpack.c.l.b16 %v25
  %v64 = vunpack.c.l.b16 %v26
  %v65 = vunpack.c.l.b16 %v27
  %v66 = vunpack.c.l.b16 %v28
  %v67 = vunpack.c.l.b16 %v29
  %v68 = vunpack.c.l.b16 %v30
  %v69 = vunpack.c.l.b16 %v31
  %v70 = vunpack.c.l.b16 %v32
  %v71 = vunpack.c.l.b16 %v33
  %v72 = vunpack.c.l.b16 %v34
  %v73 = vunpack.c.l.b16 %v35
  %v74 = vunpack.c.l.b16 %v36
  %v75 = vunpack.c.l.b16 %v37
  %v76 = vunpack.c.l.b16 %v38
  %v77 = vunpack.c.l.b16 %v39
  %v78 = vunpack.c.l.b16 %v40
  %v79 = vpack.c.b16 %v64, %v63
  %v80 = vpack.c.b16 %v66, %v65
  %v81 = vpack.c.b16 %v68, %v67
  %v82 = vpack.c.b16 %v70, %v69
  %v83 = vpack.c.b16 %v72, %v71
  %v84 = vpack.c.b16 %v74, %v73
  %v85 = vpack.c.b16 %v76, %v75
  %v86 = vpack.c.b16 %v78, %v77
  %95 = vmatprep.subr.bf16.mxu0 0
  %96 = vmatpush1.bf16.msra.mxu0 %v79
  %97 = vmatprep.subr.bf16.mxu0 0
  %98 = vmatpush1.bf16.msra.mxu0 %v80
  %99 = vmatprep.subr.bf16.mxu0 0
  %100 = vmatpush1.bf16.msra.mxu0 %v81
  %101 = vmatprep.subr.bf16.mxu0 0
  %102 = vmatpush1.bf16.msra.mxu0 %v82
  %103 = vmatprep.subr.bf16.mxu0 0
  %104 = vmatpush1.bf16.msra.mxu0 %v83
  %105 = vmatprep.subr.bf16.mxu0 0
  %106 = vmatpush1.bf16.msra.mxu0 %v84
  %107 = vmatprep.subr.bf16.mxu0 0
  %108 = vmatpush1.bf16.msra.mxu0 %v85
  %109 = vmatprep.subr.bf16.mxu0 0
  %110 = vmatpush1.bf16.msra.mxu0 %v86
  %111 = vmatprep.subr.bf16.mxu0 0
  %112 = vmatpush1.bf16.msra.mxu0 0
  %113 = vmatprep.subr.bf16.mxu0 0
  %114 = vmatpush1.bf16.msra.mxu0 0
  %115 = vmatprep.subr.bf16.mxu0 0
  %116 = vmatpush1.bf16.msra.mxu0 0
  %117 = vmatprep.subr.bf16.mxu0 0
  %118 = vmatpush1.bf16.msra.mxu0 0
  %119 = vmatprep.subr.bf16.mxu0 0
  %120 = vmatpush1.bf16.msra.mxu0 0
  %121 = vmatprep.subr.bf16.mxu0 0
  %122 = vmatpush1.bf16.msra.mxu0 0
  %123 = vmatprep.subr.bf16.mxu0 0
  %124 = vmatpush1.bf16.msra.mxu0 0
  %125 = vmatprep.subr.bf16.mxu0 0
  %126 = vmatpush1.bf16.msra.mxu0 0
  %127 = vmatprep.mubr.bf16.mxu0 0
  %128 = vmatmul.mubr.bf16.gmra.mrb[0].mxu0 %v45
  %v129 = vpop.f32.mrb[0].mxu0
  %v130 = vadd.f32 0.0, %v129
  %v131 = vpop.f32.mrb[0].mxu0
  %v132 = vpop.f32.mrb[0].mxu0
  %v133 = vadd.f32 0.0, %v132
  %v134 = vpop.f32.mrb[0].mxu0
  %135 = vdwg.mxu0
  %v136 = vadd.f32 %v21, %v130
  %v137 = vadd.f32 %v22, %v133
  %138 = vst [vmem:[%s3] sm:$0xff] %v136
  %139 = vst [vmem:[%s3 + $0x8] sm:$0xff] %v137
  // Predicated region
  $region18: #{_lambda_.10} parent=0 // pred_check
    %p140 = pneg %p15
  $region19: #{_lambda_.10} parent=0 // pred_check_branch
    %142 = sbr.rel (%p140) target = $region21
  $region20: #{_lambda_.10} parent=0 // pred_region
    %v143 = vld [vmem:[%s3] sm:$0xff]
    %v144 = vld [vmem:[%s3 + $0x8] sm:$0xff]
    %v145 = vld [vmem:[%s2] sm:$0x1]
    %v147 = vlaneseq
    %v148 = vshrl.u32 %v147, 7
    %v149 = vsub.s32 0, %v148
    %v150 = vrot.slane %v145, %v149
    %v152 = vadd.f32 %v143, %v150
    %v153 = vadd.f32 %v144, %v150
    %v154 = vmax.f32 %v152, 0.0
    %v155 = vmax.f32 %v153, 0.0
    %156 = vst [vmem:[%s3] sm:$0xff] %v154
    %157 = vst [vmem:[%s3 + $0x8] sm:$0xff] %v155
  $region21: #{_lambda_.10} parent=0 // pred_fallthru
    _
  // Predicated region
  $region22: #{_lambda_.10} parent=0 // pred_check
    _
  $region23: #{_lambda_.10} parent=0 // pred_check_branch
    %159 = sbr.rel (0) target = $region25
  $region24: #{_lambda_.10} parent=0 // pred_region
    _
  $region25: #{_lambda_.10} parent=0 // pred_fallthru
    _
  // Predicated region
  $region26: #{_lambda_.10} parent=0 // pred_check
    _
  $region27: #{_lambda_.10} parent=0 // pred_check_branch
    %161 = sbr.rel (0) target = $region29
  $region28: #{_lambda_.10} parent=0 // pred_region
    _
  $region29: #{_lambda_.10} parent=0 // pred_fallthru
    _

// kernel: _lambda_.17
$region0: #{_lambda_.17}
  #allocation0 [shape = 'u32[]', space=smem, size = 0x4, offset = 0x4, fixed_abs, tag = 'smem constant byte address 0x4 - core index']
  #allocation1 [shape = 'u32[144,128]{1,0:T(1,128)}', space=vmem, size = 0x12000, scoped, tag = 'internal scratch']
  %s0 = inlined_call_operand.vmem [shape: bf16[16,128], index: 0, kind: input, shape index: {}]
  %s1 = inlined_call_operand.vmem [shape: bf16[128,256], index: 1, kind: input, shape index: {}]
  %s2 = inlined_call_operand.vmem [shape: f32[1,256], index: 2, kind: input, shape index: {}]
  %s3 = inlined_call_operand.vmem [shape: f32[16,256], index: 3, kind: output, shape index: {}]
  %s4 = sld [smem:[#allocation0]]
  $region30: #{_lambda_.17} parent=0
    _
  %s6 = ssub.s32 1, %s4
  %s7 = scalar_select 0, %s6, %s4
  // Predicated region
  $region2: #{_lambda_.17} parent=0 // pred_check
    _
  $region3: #{_lambda_.17} parent=0 // pred_check_branch
    %9 = sbr.rel (0) target = $region5
  $region4: #{_lambda_.17} parent=0 // pred_region
    _
  $region5: #{_lambda_.17} parent=0 // pred_fallthru
    _
  // Predicated region
  $region6: #{_lambda_.17} parent=0 // pred_check
    _
  $region7: #{_lambda_.17} parent=0 // pred_check_branch
    %11 = sbr.rel (0) target = $region9
  $region8: #{_lambda_.17} parent=0 // pred_region
    _
  $region9: #{_lambda_.17} parent=0 // pred_fallthru
    _
  // Predicated region
  $region10: #{_lambda_.17} parent=0 // pred_check
    _
  $region11: #{_lambda_.17} parent=0 // pred_check_branch
    %13 = sbr.rel (0) target = $region13
  $region12: #{_lambda_.17} parent=0 // pred_region
    _
  $region13: #{_lambda_.17} parent=0 // pred_fallthru
    _
  %p15 = scmp.eq.s32.totalorder 0, 0
  // Predicated region
  $region14: #{_lambda_.17} parent=0 // pred_check
    %p16 = pneg %p15
  $region15: #{_lambda_.17} parent=0 // pred_check_branch
    %18 = sbr.rel (%p16) target = $region17
  $region16: #{_lambda_.17} parent=0 // pred_region
    %19 = vst [vmem:[%s3] sm:$0xff] 0.0
    %20 = vst [vmem:[%s3 + $0x8] sm:$0xff] 0.0
    %21 = vst [vmem:[%s3 + $0x10] sm:$0xff] 0.0
    %22 = vst [vmem:[%s3 + $0x18] sm:$0xff] 0.0
  $region17: #{_lambda_.17} parent=0 // pred_fallthru
    _
  %v23 = vld [vmem:[%s3] sm:$0xff]
  %v24 = vld [vmem:[%s3 + $0x8] sm:$0xff]
  %v25 = vld [vmem:[%s3 + $0x10] sm:$0xff]
  %v26 = vld [vmem:[%s3 + $0x18] sm:$0xff]
  %v27 = vld [vmem:[%s0] sm:$0xf]
  %v28 = vld [vmem:[%s0 + $0x4] sm:$0xf]
  %v29 = vld [vmem:[%s1] sm:$0xff]
  %v30 = vld [vmem:[%s1 + $0x8] sm:$0xff]
  %v31 = vld [vmem:[%s1 + $0x10] sm:$0xff]
  %v32 = vld [vmem:[%s1 + $0x18] sm:$0xff]
  %v33 = vld [vmem:[%s1 + $0x20] sm:$0xff]
  %v34 = vld [vmem:[%s1 + $0x28] sm:$0xff]
  %v35 = vld [vmem:[%s1 + $0x30] sm:$0xff]
  %v36 = vld [vmem:[%s1 + $0x38] sm:$0xff]
  %v37 = vld [vmem:[%s1 + $0x40] sm:$0xff]
  %v38 = vld [vmem:[%s1 + $0x48] sm:$0xff]
  %v39 = vld [vmem:[%s1 + $0x50] sm:$0xff]
  %v40 = vld [vmem:[%s1 + $0x58] sm:$0xff]
  %v41 = vld [vmem:[%s1 + $0x60] sm:$0xff]
  %v42 = vld [vmem:[%s1 + $0x68] sm:$0xff]
  %v43 = vld [vmem:[%s1 + $0x70] sm:$0xff]
  %v44 = vld [vmem:[%s1 + $0x78] sm:$0xff]
  %v47 = vunpack.c.l.b16 %v27
  %v48 = vunpack.c.l.b16 %v28
  %v49 = vpack.c.b16 %v48, %v47
  %v67 = vunpack.c.l.b16 %v29
  %v68 = vunpack.c.h.b16 %v29
  %v69 = vunpack.c.l.b16 %v30
  %v70 = vunpack.c.h.b16 %v30
  %v71 = vunpack.c.l.b16 %v31
  %v72 = vunpack.c.h.b16 %v31
  %v73 = vunpack.c.l.b16 %v32
  %v74 = vunpack.c.h.b16 %v32
  %v75 = vunpack.c.l.b16 %v33
  %v76 = vunpack.c.h.b16 %v33
  %v77 = vunpack.c.l.b16 %v34
  %v78 = vunpack.c.h.b16 %v34
  %v79 = vunpack.c.l.b16 %v35
  %v80 = vunpack.c.h.b16 %v35
  %v81 = vunpack.c.l.b16 %v36
  %v82 = vunpack.c.h.b16 %v36
  %v83 = vunpack.c.l.b16 %v37
  %v84 = vunpack.c.h.b16 %v37
  %v85 = vunpack.c.l.b16 %v38
  %v86 = vunpack.c.h.b16 %v38
  %v87 = vunpack.c.l.b16 %v39
  %v88 = vunpack.c.h.b16 %v39
  %v89 = vunpack.c.l.b16 %v40
  %v90 = vunpack.c.h.b16 %v40
  %v91 = vunpack.c.l.b16 %v41
  %v92 = vunpack.c.h.b16 %v41
  %v93 = vunpack.c.l.b16 %v42
  %v94 = vunpack.c.h.b16 %v42
  %v95 = vunpack.c.l.b16 %v43
  %v96 = vunpack.c.h.b16 %v43
  %v97 = vunpack.c.l.b16 %v44
  %v98 = vunpack.c.h.b16 %v44
  %v99 = vpack.c.b16 %v69, %v67
  %v100 = vpack.c.b16 %v70, %v68
  %v101 = vpack.c.b16 %v73, %v71
  %v102 = vpack.c.b16 %v74, %v72
  %v103 = vpack.c.b16 %v77, %v75
  %v104 = vpack.c.b16 %v78, %v76
  %v105 = vpack.c.b16 %v81, %v79
  %v106 = vpack.c.b16 %v82, %v80
  %v107 = vpack.c.b16 %v85, %v83
  %v108 = vpack.c.b16 %v86, %v84
  %v109 = vpack.c.b16 %v89, %v87
  %v110 = vpack.c.b16 %v90, %v88
  %v111 = vpack.c.b16 %v93, %v91
  %v112 = vpack.c.b16 %v94, %v92
  %v113 = vpack.c.b16 %v97, %v95
  %v114 = vpack.c.b16 %v98, %v96
  %131 = vmatprep.subr.bf16.mxu0 %v100
  %132 = vmatpush1.bf16.msra.mxu0 %v99
  %133 = vmatprep.subr.bf16.mxu0 %v102
  %134 = vmatpush1.bf16.msra.mxu0 %v101
  %135 = vmatprep.subr.bf16.mxu0 %v104
  %136 = vmatpush1.bf16.msra.mxu0 %v103
  %137 = vmatprep.subr.bf16.mxu0 %v106
  %138 = vmatpush1.bf16.msra.mxu0 %v105
  %139 = vmatprep.subr.bf16.mxu0 %v108
  %140 = vmatpush1.bf16.msra.mxu0 %v107
  %141 = vmatprep.subr.bf16.mxu0 %v110
  %142 = vmatpush1.bf16.msra.mxu0 %v109
  %143 = vmatprep.subr.bf16.mxu0 %v112
  %144 = vmatpush1.bf16.msra.mxu0 %v111
  %145 = vmatprep.subr.bf16.mxu0 %v114
  %146 = vmatpush1.bf16.msra.mxu0 %v113
  %147 = vmatprep.subr.bf16.mxu0 0
  %148 = vmatpush1.bf16.msra.mxu0 0
  %149 = vmatprep.subr.bf16.mxu0 0
  %150 = vmatpush1.bf16.msra.mxu0 0
  %151 = vmatprep.subr.bf16.mxu0 0
  %152 = vmatpush1.bf16.msra.mxu0 0
  %153 = vmatprep.subr.bf16.mxu0 0
  %154 = vmatpush1.bf16.msra.mxu0 0
  %155 = vmatprep.subr.bf16.mxu0 0
  %156 = vmatpush1.bf16.msra.mxu0 0
  %157 = vmatprep.subr.bf16.mxu0 0
  %158 = vmatpush1.bf16.msra.mxu0 0
  %159 = vmatprep.subr.bf16.mxu0 0
  %160 = vmatpush1.bf16.msra.mxu0 0
  %161 = vmatprep.subr.bf16.mxu0 0
  %162 = vmatpush1.bf16.msra.mxu0 0
  %163 = vmatprep.mubr.bf16.mxu0 0
  %164 = vmatmul.mubr.bf16.gmra.mrb[0].mxu0 %v49
  %v165 = vpop.f32.mrb[0].mxu0
  %v166 = vadd.f32 0.0, %v165
  %v167 = vpop.f32.mrb[0].mxu0
  %v168 = vadd.f32 0.0, %v167
  %v169 = vpop.f32.mrb[0].mxu0
  %v170 = vadd.f32 0.0, %v169
  %v171 = vpop.f32.mrb[0].mxu0
  %v172 = vadd.f32 0.0, %v171
  %173 = vdwg.mxu0
  %v174 = vadd.f32 %v23, %v166
  %v175 = vadd.f32 %v24, %v168
  %v176 = vadd.f32 %v25, %v170
  %v177 = vadd.f32 %v26, %v172
  %178 = vst [vmem:[%s3] sm:$0xff] %v174
  %179 = vst [vmem:[%s3 + $0x8] sm:$0xff] %v175
  %180 = vst [vmem:[%s3 + $0x10] sm:$0xff] %v176
  %181 = vst [vmem:[%s3 + $0x18] sm:$0xff] %v177
  // Predicated region
  $region18: #{_lambda_.17} parent=0 // pred_check
    %p182 = pneg %p15
  $region19: #{_lambda_.17} parent=0 // pred_check_branch
    %184 = sbr.rel (%p182) target = $region21
  $region20: #{_lambda_.17} parent=0 // pred_region
    %v185 = vld [vmem:[%s3] sm:$0xff]
    %v186 = vld [vmem:[%s3 + $0x8] sm:$0xff]
    %v187 = vld [vmem:[%s3 + $0x10] sm:$0xff]
    %v188 = vld [vmem:[%s3 + $0x18] sm:$0xff]
    %v189 = vld [vmem:[%s2] sm:$0x3]
    %v191 = vlaneseq
    %v192 = vshrl.u32 %v191, 7
    %v193 = vsub.s32 0, %v192
    %v194 = vrot.slane %v189, %v193
    %v195 = vlaneseq
    %v196 = vshrl.u32 %v195, 7
    %v197 = vsub.s32 1, %v196
    %v198 = vrot.slane %v189, %v197
    %v201 = vadd.f32 %v185, %v194
    %v202 = vadd.f32 %v186, %v198
    %v203 = vadd.f32 %v187, %v194
    %v204 = vadd.f32 %v188, %v198
    %v205 = vmax.f32 %v201, 0.0
    %v206 = vmax.f32 %v202, 0.0
    %v207 = vmax.f32 %v203, 0.0
    %v208 = vmax.f32 %v204, 0.0
    %209 = vst [vmem:[%s3] sm:$0xff] %v205
    %210 = vst [vmem:[%s3 + $0x8] sm:$0xff] %v206
    %211 = vst [vmem:[%s3 + $0x10] sm:$0xff] %v207
    %212 = vst [vmem:[%s3 + $0x18] sm:$0xff] %v208
  $region21: #{_lambda_.17} parent=0 // pred_fallthru
    _
  // Predicated region
  $region22: #{_lambda_.17} parent=0 // pred_check
    _
  $region23: #{_lambda_.17} parent=0 // pred_check_branch
    %214 = sbr.rel (0) target = $region25
  $region24: #{_lambda_.17} parent=0 // pred_region
    _
  $region25: #{_lambda_.17} parent=0 // pred_fallthru
    _
  // Predicated region
  $region26: #{_lambda_.17} parent=0 // pred_check
    _
  $region27: #{_lambda_.17} parent=0 // pred_check_branch
    %216 = sbr.rel (0) target = $region29
  $region28: #{_lambda_.17} parent=0 // pred_region
    _
  $region29: #{_lambda_.17} parent=0 // pred_fallthru
    _

// kernel: _lambda_.18
$region0: #{_lambda_.18}
  #allocation0 [shape = 'u32[]', space=smem, size = 0x4, offset = 0x4, fixed_abs, tag = 'smem constant byte address 0x4 - core index']
  #allocation1 [shape = 'u32[144,128]{1,0:T(1,128)}', space=vmem, size = 0x12000, scoped, tag = 'internal scratch']
  %s0 = inlined_call_operand.vmem [shape: bf16[16,256], index: 0, kind: input, shape index: {}]
  %s1 = inlined_call_operand.vmem [shape: bf16[256,128], index: 1, kind: input, shape index: {}]
  %s2 = inlined_call_operand.vmem [shape: f32[1,128], index: 2, kind: input, shape index: {}]
  %s3 = inlined_call_operand.vmem [shape: f32[16,128], index: 3, kind: output, shape index: {}]
  %s4 = sld [smem:[#allocation0]]
  $region30: #{_lambda_.18} parent=0
    _
  %s6 = ssub.s32 1, %s4
  %s7 = scalar_select 0, %s6, %s4
  // Predicated region
  $region2: #{_lambda_.18} parent=0 // pred_check
    _
  $region3: #{_lambda_.18} parent=0 // pred_check_branch
    %9 = sbr.rel (0) target = $region5
  $region4: #{_lambda_.18} parent=0 // pred_region
    _
  $region5: #{_lambda_.18} parent=0 // pred_fallthru
    _
  // Predicated region
  $region6: #{_lambda_.18} parent=0 // pred_check
    _
  $region7: #{_lambda_.18} parent=0 // pred_check_branch
    %11 = sbr.rel (0) target = $region9
  $region8: #{_lambda_.18} parent=0 // pred_region
    _
  $region9: #{_lambda_.18} parent=0 // pred_fallthru
    _
  // Predicated region
  $region10: #{_lambda_.18} parent=0 // pred_check
    _
  $region11: #{_lambda_.18} parent=0 // pred_check_branch
    %13 = sbr.rel (0) target = $region13
  $region12: #{_lambda_.18} parent=0 // pred_region
    _
  $region13: #{_lambda_.18} parent=0 // pred_fallthru
    _
  %p15 = scmp.eq.s32.totalorder 0, 0
  // Predicated region
  $region14: #{_lambda_.18} parent=0 // pred_check
    %p16 = pneg %p15
  $region15: #{_lambda_.18} parent=0 // pred_check_branch
    %18 = sbr.rel (%p16) target = $region17
  $region16: #{_lambda_.18} parent=0 // pred_region
    %19 = vst [vmem:[%s3] sm:$0xff] 0.0
    %20 = vst [vmem:[%s3 + $0x8] sm:$0xff] 0.0
  $region17: #{_lambda_.18} parent=0 // pred_fallthru
    _
  %v21 = vld [vmem:[%s3] sm:$0xff]
  %v22 = vld [vmem:[%s3 + $0x8] sm:$0xff]
  %v23 = vld [vmem:[%s0] sm:$0xff]
  %v24 = vld [vmem:[%s0 + $0x8] sm:$0xff]
  %v25 = vld [vmem:[%s1] sm:$0xf]
  %v26 = vld [vmem:[%s1 + $0x4] sm:$0xf]
  %v27 = vld [vmem:[%s1 + $0x8] sm:$0xf]
  %v28 = vld [vmem:[%s1 + $0xc] sm:$0xf]
  %v29 = vld [vmem:[%s1 + $0x10] sm:$0xf]
  %v30 = vld [vmem:[%s1 + $0x14] sm:$0xf]
  %v31 = vld [vmem:[%s1 + $0x18] sm:$0xf]
  %v32 = vld [vmem:[%s1 + $0x1c] sm:$0xf]
  %v33 = vld [vmem:[%s1 + $0x20] sm:$0xf]
  %v34 = vld [vmem:[%s1 + $0x24] sm:$0xf]
  %v35 = vld [vmem:[%s1 + $0x28] sm:$0xf]
  %v36 = vld [vmem:[%s1 + $0x2c] sm:$0xf]
  %v37 = vld [vmem:[%s1 + $0x30] sm:$0xf]
  %v38 = vld [vmem:[%s1 + $0x34] sm:$0xf]
  %v39 = vld [vmem:[%s1 + $0x38] sm:$0xf]
  %v40 = vld [vmem:[%s1 + $0x3c] sm:$0xf]
  %v41 = vld [vmem:[%s1 + $0x40] sm:$0xf]
  %v42 = vld [vmem:[%s1 + $0x44] sm:$0xf]
  %v43 = vld [vmem:[%s1 + $0x48] sm:$0xf]
  %v44 = vld [vmem:[%s1 + $0x4c] sm:$0xf]
  %v45 = vld [vmem:[%s1 + $0x50] sm:$0xf]
  %v46 = vld [vmem:[%s1 + $0x54] sm:$0xf]
  %v47 = vld [vmem:[%s1 + $0x58] sm:$0xf]
  %v48 = vld [vmem:[%s1 + $0x5c] sm:$0xf]
  %v49 = vld [vmem:[%s1 + $0x60] sm:$0xf]
  %v50 = vld [vmem:[%s1 + $0x64] sm:$0xf]
  %v51 = vld [vmem:[%s1 + $0x68] sm:$0xf]
  %v52 = vld [vmem:[%s1 + $0x6c] sm:$0xf]
  %v53 = vld [vmem:[%s1 + $0x70] sm:$0xf]
  %v54 = vld [vmem:[%s1 + $0x74] sm:$0xf]
  %v55 = vld [vmem:[%s1 + $0x78] sm:$0xf]
  %v56 = vld [vmem:[%s1 + $0x7c] sm:$0xf]
  %v59 = vunpack.c.l.b16 %v23
  %v60 = vunpack.c.h.b16 %v23
  %v61 = vunpack.c.l.b16 %v24
  %v62 = vunpack.c.h.b16 %v24
  %v63 = vpack.c.b16 %v61, %v59
  %v64 = vpack.c.b16 %v62, %v60
  %v99 = vunpack.c.l.b16 %v25
  %v100 = vunpack.c.l.b16 %v26
  %v101 = vunpack.c.l.b16 %v27
  %v102 = vunpack.c.l.b16 %v28
  %v103 = vunpack.c.l.b16 %v29
  %v104 = vunpack.c.l.b16 %v30
  %v105 = vunpack.c.l.b16 %v31
  %v106 = vunpack.c.l.b16 %v32
  %v107 = vunpack.c.l.b16 %v33
  %v108 = vunpack.c.l.b16 %v34
  %v109 = vunpack.c.l.b16 %v35
  %v110 = vunpack.c.l.b16 %v36
  %v111 = vunpack.c.l.b16 %v37
  %v112 = vunpack.c.l.b16 %v38
  %v113 = vunpack.c.l.b16 %v39
  %v114 = vunpack.c.l.b16 %v40
  %v115 = vunpack.c.l.b16 %v41
  %v116 = vunpack.c.l.b16 %v42
  %v117 = vunpack.c.l.b16 %v43
  %v118 = vunpack.c.l.b16 %v44
  %v119 = vunpack.c.l.b16 %v45
  %v120 = vunpack.c.l.b16 %v46
  %v121 = vunpack.c.l.b16 %v47
  %v122 = vunpack.c.l.b16 %v48
  %v123 = vunpack.c.l.b16 %v49
  %v124 = vunpack.c.l.b16 %v50
  %v125 = vunpack.c.l.b16 %v51
  %v126 = vunpack.c.l.b16 %v52
  %v127 = vunpack.c.l.b16 %v53
  %v128 = vunpack.c.l.b16 %v54
  %v129 = vunpack.c.l.b16 %v55
  %v130 = vunpack.c.l.b16 %v56
  %v131 = vpack.c.b16 %v100, %v99
  %v132 = vpack.c.b16 %v102, %v101
  %v133 = vpack.c.b16 %v104, %v103
  %v134 = vpack.c.b16 %v106, %v105
  %v135 = vpack.c.b16 %v108, %v107
  %v136 = vpack.c.b16 %v110, %v109
  %v137 = vpack.c.b16 %v112, %v111
  %v138 = vpack.c.b16 %v114, %v113
  %v139 = vpack.c.b16 %v116, %v115
  %v140 = vpack.c.b16 %v118, %v117
  %v141 = vpack.c.b16 %v120, %v119
  %v142 = vpack.c.b16 %v122, %v121
  %v143 = vpack.c.b16 %v124, %v123
  %v144 = vpack.c.b16 %v126, %v125
  %v145 = vpack.c.b16 %v128, %v127
  %v146 = vpack.c.b16 %v130, %v129
  %163 = vmatprep.subr.bf16.mxu0 0
  %164 = vmatpush1.bf16.msra.mxu0 %v131
  %165 = vmatprep.subr.bf16.mxu0 0
  %166 = vmatpush1.bf16.msra.mxu0 %v132
  %167 = vmatprep.subr.bf16.mxu0 0
  %168 = vmatpush1.bf16.msra.mxu0 %v133
  %169 = vmatprep.subr.bf16.mxu0 0
  %170 = vmatpush1.bf16.msra.mxu0 %v134
  %171 = vmatprep.subr.bf16.mxu0 0
  %172 = vmatpush1.bf16.msra.mxu0 %v135
  %173 = vmatprep.subr.bf16.mxu0 0
  %174 = vmatpush1.bf16.msra.mxu0 %v136
  %175 = vmatprep.subr.bf16.mxu0 0
  %176 = vmatpush1.bf16.msra.mxu0 %v137
  %177 = vmatprep.subr.bf16.mxu0 0
  %178 = vmatpush1.bf16.msra.mxu0 %v138
  %179 = vmatprep.subr.bf16.mxu0 0
  %180 = vmatpush1.bf16.msra.mxu0 %v139
  %181 = vmatprep.subr.bf16.mxu0 0
  %182 = vmatpush1.bf16.msra.mxu0 %v140
  %183 = vmatprep.subr.bf16.mxu0 0
  %184 = vmatpush1.bf16.msra.mxu0 %v141
  %185 = vmatprep.subr.bf16.mxu0 0
  %186 = vmatpush1.bf16.msra.mxu0 %v142
  %187 = vmatprep.subr.bf16.mxu0 0
  %188 = vmatpush1.bf16.msra.mxu0 %v143
  %189 = vmatprep.subr.bf16.mxu0 0
  %190 = vmatpush1.bf16.msra.mxu0 %v144
  %191 = vmatprep.subr.bf16.mxu0 0
  %192 = vmatpush1.bf16.msra.mxu0 %v145
  %193 = vmatprep.subr.bf16.mxu0 0
  %194 = vmatpush1.bf16.msra.mxu0 %v146
  %195 = vmatprep.mubr.bf16.mxu0 %v64
  %196 = vmatmul.mubr.bf16.gmra.mrb[0].mxu0 %v63
  %v197 = vpop.f32.mrb[0].mxu0
  %v198 = vadd.f32 0.0, %v197
  %v199 = vpop.f32.mrb[0].mxu0
  %v200 = vpop.f32.mrb[0].mxu0
  %v201 = vadd.f32 0.0, %v200
  %v202 = vpop.f32.mrb[0].mxu0
  %203 = vdwg.mxu0
  %v204 = vadd.f32 %v21, %v198
  %v205 = vadd.f32 %v22, %v201
  %206 = vst [vmem:[%s3] sm:$0xff] %v204
  %207 = vst [vmem:[%s3 + $0x8] sm:$0xff] %v205
  // Predicated region
  $region18: #{_lambda_.18} parent=0 // pred_check
    %p208 = pneg %p15
  $region19: #{_lambda_.18} parent=0 // pred_check_branch
    %210 = sbr.rel (%p208) target = $region21
  $region20: #{_lambda_.18} parent=0 // pred_region
    %v211 = vld [vmem:[%s3] sm:$0xff]
    %v212 = vld [vmem:[%s3 + $0x8] sm:$0xff]
    %v213 = vld [vmem:[%s2] sm:$0x1]
    %v215 = vlaneseq
    %v216 = vshrl.u32 %v215, 7
    %v217 = vsub.s32 0, %v216
    %v218 = vrot.slane %v213, %v217
    %v220 = vadd.f32 %v211, %v218
    %v221 = vadd.f32 %v212, %v218
    %v222 = vmax.f32 %v220, 0.0
    %v223 = vmax.f32 %v221, 0.0
    %224 = vst [vmem:[%s3] sm:$0xff] %v222
    %225 = vst [vmem:[%s3 + $0x8] sm:$0xff] %v223
  $region21: #{_lambda_.18} parent=0 // pred_fallthru
    _
  // Predicated region
  $region22: #{_lambda_.18} parent=0 // pred_check
    _
  $region23: #{_lambda_.18} parent=0 // pred_check_branch
    %227 = sbr.rel (0) target = $region25
  $region24: #{_lambda_.18} parent=0 // pred_region
    _
  $region25: #{_lambda_.18} parent=0 // pred_fallthru
    _
  // Predicated region
  $region26: #{_lambda_.18} parent=0 // pred_check
    _
  $region27: #{_lambda_.18} parent=0 // pred_check_branch
    %229 = sbr.rel (0) target = $region29
  $region28: #{_lambda_.18} parent=0 // pred_region
    _
  $region29: #{_lambda_.18} parent=0 // pred_fallthru
    _

// kernel: _lambda_.19
$region0: #{_lambda_.19}
  #allocation0 [shape = 'u32[]', space=smem, size = 0x4, offset = 0x4, fixed_abs, tag = 'smem constant byte address 0x4 - core index']
  #allocation1 [shape = 'u32[144,128]{1,0:T(1,128)}', space=vmem, size = 0x12000, scoped, tag = 'internal scratch']
  %s0 = inlined_call_operand.vmem [shape: bf16[16,128], index: 0, kind: input, shape index: {}]
  %s1 = inlined_call_operand.vmem [shape: bf16[128,128], index: 1, kind: input, shape index: {}]
  %s2 = inlined_call_operand.vmem [shape: f32[1,128], index: 2, kind: input, shape index: {}]
  %s3 = inlined_call_operand.vmem [shape: f32[16,128], index: 3, kind: output, shape index: {}]
  %s4 = sld [smem:[#allocation0]]
  $region30: #{_lambda_.19} parent=0
    _
  %s6 = ssub.s32 1, %s4
  %s7 = scalar_select 0, %s6, %s4
  // Predicated region
  $region2: #{_lambda_.19} parent=0 // pred_check
    _
  $region3: #{_lambda_.19} parent=0 // pred_check_branch
    %9 = sbr.rel (0) target = $region5
  $region4: #{_lambda_.19} parent=0 // pred_region
    _
  $region5: #{_lambda_.19} parent=0 // pred_fallthru
    _
  // Predicated region
  $region6: #{_lambda_.19} parent=0 // pred_check
    _
  $region7: #{_lambda_.19} parent=0 // pred_check_branch
    %11 = sbr.rel (0) target = $region9
  $region8: #{_lambda_.19} parent=0 // pred_region
    _
  $region9: #{_lambda_.19} parent=0 // pred_fallthru
    _
  // Predicated region
  $region10: #{_lambda_.19} parent=0 // pred_check
    _
  $region11: #{_lambda_.19} parent=0 // pred_check_branch
    %13 = sbr.rel (0) target = $region13
  $region12: #{_lambda_.19} parent=0 // pred_region
    _
  $region13: #{_lambda_.19} parent=0 // pred_fallthru
    _
  %p15 = scmp.eq.s32.totalorder 0, 0
  // Predicated region
  $region14: #{_lambda_.19} parent=0 // pred_check
    %p16 = pneg %p15
  $region15: #{_lambda_.19} parent=0 // pred_check_branch
    %18 = sbr.rel (%p16) target = $region17
  $region16: #{_lambda_.19} parent=0 // pred_region
    %19 = vst [vmem:[%s3] sm:$0xff] 0.0
    %20 = vst [vmem:[%s3 + $0x8] sm:$0xff] 0.0
  $region17: #{_lambda_.19} parent=0 // pred_fallthru
    _
  %v21 = vld [vmem:[%s3] sm:$0xff]
  %v22 = vld [vmem:[%s3 + $0x8] sm:$0xff]
  %v23 = vld [vmem:[%s0] sm:$0xf]
  %v24 = vld [vmem:[%s0 + $0x4] sm:$0xf]
  %v25 = vld [vmem:[%s1] sm:$0xf]
  %v26 = vld [vmem:[%s1 + $0x4] sm:$0xf]
  %v27 = vld [vmem:[%s1 + $0x8] sm:$0xf]
  %v28 = vld [vmem:[%s1 + $0xc] sm:$0xf]
  %v29 = vld [vmem:[%s1 + $0x10] sm:$0xf]
  %v30 = vld [vmem:[%s1 + $0x14] sm:$0xf]
  %v31 = vld [vmem:[%s1 + $0x18] sm:$0xf]
  %v32 = vld [vmem:[%s1 + $0x1c] sm:$0xf]
  %v33 = vld [vmem:[%s1 + $0x20] sm:$0xf]
  %v34 = vld [vmem:[%s1 + $0x24] sm:$0xf]
  %v35 = vld [vmem:[%s1 + $0x28] sm:$0xf]
  %v36 = vld [vmem:[%s1 + $0x2c] sm:$0xf]
  %v37 = vld [vmem:[%s1 + $0x30] sm:$0xf]
  %v38 = vld [vmem:[%s1 + $0x34] sm:$0xf]
  %v39 = vld [vmem:[%s1 + $0x38] sm:$0xf]
  %v40 = vld [vmem:[%s1 + $0x3c] sm:$0xf]
  %v43 = vunpack.c.l.b16 %v23
  %v44 = vunpack.c.l.b16 %v24
  %v45 = vpack.c.b16 %v44, %v43
  %v63 = vunpack.c.l.b16 %v25
  %v64 = vunpack.c.l.b16 %v26
  %v65 = vunpack.c.l.b16 %v27
  %v66 = vunpack.c.l.b16 %v28
  %v67 = vunpack.c.l.b16 %v29
  %v68 = vunpack.c.l.b16 %v30
  %v69 = vunpack.c.l.b16 %v31
  %v70 = vunpack.c.l.b16 %v32
  %v71 = vunpack.c.l.b16 %v33
  %v72 = vunpack.c.l.b16 %v34
  %v73 = vunpack.c.l.b16 %v35
  %v74 = vunpack.c.l.b16 %v36
  %v75 = vunpack.c.l.b16 %v37
  %v76 = vunpack.c.l.b16 %v38
  %v77 = vunpack.c.l.b16 %v39
  %v78 = vunpack.c.l.b16 %v40
  %v79 = vpack.c.b16 %v64, %v63
  %v80 = vpack.c.b16 %v66, %v65
  %v81 = vpack.c.b16 %v68, %v67
  %v82 = vpack.c.b16 %v70, %v69
  %v83 = vpack.c.b16 %v72, %v71
  %v84 = vpack.c.b16 %v74, %v73
  %v85 = vpack.c.b16 %v76, %v75
  %v86 = vpack.c.b16 %v78, %v77
  %95 = vmatprep.subr.bf16.mxu0 0
  %96 = vmatpush1.bf16.msra.mxu0 %v79
  %97 = vmatprep.subr.bf16.mxu0 0
  %98 = vmatpush1.bf16.msra.mxu0 %v80
  %99 = vmatprep.subr.bf16.mxu0 0
  %100 = vmatpush1.bf16.msra.mxu0 %v81
  %101 = vmatprep.subr.bf16.mxu0 0
  %102 = vmatpush1.bf16.msra.mxu0 %v82
  %103 = vmatprep.subr.bf16.mxu0 0
  %104 = vmatpush1.bf16.msra.mxu0 %v83
  %105 = vmatprep.subr.bf16.mxu0 0
  %106 = vmatpush1.bf16.msra.mxu0 %v84
  %107 = vmatprep.subr.bf16.mxu0 0
  %108 = vmatpush1.bf16.msra.mxu0 %v85
  %109 = vmatprep.subr.bf16.mxu0 0
  %110 = vmatpush1.bf16.msra.mxu0 %v86
  %111 = vmatprep.subr.bf16.mxu0 0
  %112 = vmatpush1.bf16.msra.mxu0 0
  %113 = vmatprep.subr.bf16.mxu0 0
  %114 = vmatpush1.bf16.msra.mxu0 0
  %115 = vmatprep.subr.bf16.mxu0 0
  %116 = vmatpush1.bf16.msra.mxu0 0
  %117 = vmatprep.subr.bf16.mxu0 0
  %118 = vmatpush1.bf16.msra.mxu0 0
  %119 = vmatprep.subr.bf16.mxu0 0
  %120 = vmatpush1.bf16.msra.mxu0 0
  %121 = vmatprep.subr.bf16.mxu0 0
  %122 = vmatpush1.bf16.msra.mxu0 0
  %123 = vmatprep.subr.bf16.mxu0 0
  %124 = vmatpush1.bf16.msra.mxu0 0
  %125 = vmatprep.subr.bf16.mxu0 0
  %126 = vmatpush1.bf16.msra.mxu0 0
  %127 = vmatprep.mubr.bf16.mxu0 0
  %128 = vmatmul.mubr.bf16.gmra.mrb[0].mxu0 %v45
  %v129 = vpop.f32.mrb[0].mxu0
  %v130 = vadd.f32 0.0, %v129
  %v131 = vpop.f32.mrb[0].mxu0
  %v132 = vpop.f32.mrb[0].mxu0
  %v133 = vadd.f32 0.0, %v132
  %v134 = vpop.f32.mrb[0].mxu0
  %135 = vdwg.mxu0
  %v136 = vadd.f32 %v21, %v130
  %v137 = vadd.f32 %v22, %v133
  %138 = vst [vmem:[%s3] sm:$0xff] %v136
  %139 = vst [vmem:[%s3 + $0x8] sm:$0xff] %v137
  // Predicated region
  $region18: #{_lambda_.19} parent=0 // pred_check
    %p140 = pneg %p15
  $region19: #{_lambda_.19} parent=0 // pred_check_branch
    %142 = sbr.rel (%p140) target = $region21
  $region20: #{_lambda_.19} parent=0 // pred_region
    %v143 = vld [vmem:[%s3] sm:$0xff]
    %v144 = vld [vmem:[%s3 + $0x8] sm:$0xff]
    %v145 = vld [vmem:[%s2] sm:$0x1]
    %v147 = vlaneseq
    %v148 = vshrl.u32 %v147, 7
    %v149 = vsub.s32 0, %v148
    %v150 = vrot.slane %v145, %v149
    %v152 = vadd.f32 %v143, %v150
    %v153 = vadd.f32 %v144, %v150
    %154 = vst [vmem:[%s3] sm:$0xff] %v152
    %155 = vst [vmem:[%s3 + $0x8] sm:$0xff] %v153
  $region21: #{_lambda_.19} parent=0 // pred_fallthru
    _
  // Predicated region
  $region22: #{_lambda_.19} parent=0 // pred_check
    _
  $region23: #{_lambda_.19} parent=0 // pred_check_branch
    %157 = sbr.rel (0) target = $region25
  $region24: #{_lambda_.19} parent=0 // pred_region
    _
  $region25: #{_lambda_.19} parent=0 // pred_fallthru
    _
  // Predicated region
  $region26: #{_lambda_.19} parent=0 // pred_check
    _
  $region27: #{_lambda_.19} parent=0 // pred_check_branch
    %159 = sbr.rel (0) target = $region29
  $region28: #{_lambda_.19} parent=0 // pred_region
    _
  $region29: #{_lambda_.19} parent=0 // pred_fallthru
    _

</llo_original>
